<compile_context>
chip_gen: v7x
topology: tpu7x:2x2x1
jax: 0.10.0
libtpu: 0.0.40
codegen_flags: <defaults>
</compile_context>

<pallas_src>
import functools

import jax
import jax.numpy as jnp
from jax.experimental import pallas as pl
from jax.experimental.pallas import tpu as pltpu


_LANE = 128
# Cap on batch elements blocked per grid step (trace/compile-time sanity).
_MAX_NB = 8


def _tpu_generation():
    """Best-effort (vmem_capacity_bytes, multi_tensorcore) for the local TPU."""
    kind = ""
    try:
        kind = jax.devices()[0].device_kind.lower()
    except Exception:
        pass
    multi_tc = "v7" in kind
    try:
        vmem_cap = int(pltpu.get_tpu_info().vmem_capacity_bytes)
    except Exception:
        # Conservative fallback: assume the small-VMEM generation if unsure.
        vmem_cap = (64 if (multi_tc or not kind) else 128) * 1024 * 1024
    return vmem_cap, multi_tc


def _gate_from_pooled(pooled, w1, w2):
    """pooled: (C, K) pooled columns; w1: (Cmid, C); w2: (C, Cmid) -> (C, K)."""
    # 1x1 convs == matmuls over the channel dim.  With pooled stored
    # column-wise, w1/w2 are already in natural matmul orientation (no
    # transposes in kernel or wrapper).  K <= 2*_MAX_NB: pure latency, hidden
    # under the x DMA.
    h = jnp.dot(w1, pooled, preferred_element_type=jnp.float32)      # (Cmid, K)
    h = jnp.maximum(h, 0.0)                                          # ReLU
    return jnp.dot(w2, h, preferred_element_type=jnp.float32)        # (C, K)


# --------------------------- single-pass kernel --------------------------- #
def _ca_single_pass_kernel(x_ref, w1_ref, w2_ref, o_ref):
    # x_ref/o_ref: (nb, C, HW) block (full HW => no padding, no lane masks);
    # weights fully resident.
    nb, _, hw = x_ref.shape
    inv_hw = 1.0 / float(hw)
    w1 = w1_ref[...]                                                 # (Cmid, C)
    w2 = w2_ref[...]                                                 # (C, Cmid)

    # Per-batch global pools, collected column-wise into one (C, 2*nb) matrix
    # so the two matmuls, the ReLU and the sigmoid run once for the whole
    # block (one MXU/EUP push instead of nb).  Only tiny (C, 1) values are
    # carried across loop iterations, so the static unroll cannot spill.
    avgs, maxs = [], []
    for i in range(nb):
        xi = x_ref[i]                                                # (C, HW)
        avgs.append(jnp.sum(xi.astype(jnp.float32), axis=-1, keepdims=True) * inv_hw)
        maxs.append(jnp.max(xi, axis=-1, keepdims=True).astype(jnp.float32))
    pooled = jnp.concatenate(avgs + maxs, axis=-1)                   # (C, 2*nb)

    out = _gate_from_pooled(pooled, w1, w2)                          # (C, 2*nb)
    # fc(avg) + fc(max), sigmoid, then cast to x's dtype so the dominant
    # elementwise multiply does not promote the whole tile to f32.
    gate = jax.nn.sigmoid(out[:, :nb] + out[:, nb:]).astype(o_ref.dtype)  # (C, nb)

    # Streaming load -> broadcast-multiply -> store per batch element; nothing
    # large is live across iterations.
    for i in range(nb):
        o_ref[i] = (x_ref[i] * gate[:, i:i + 1]).astype(o_ref.dtype)


# ----------------------- two-phase (HW-tiled) kernels ---------------------- #
def _ca_stats_gate_kernel(x_ref, w1_ref, w2_ref, gate_ref, sum_sc, max_sc,
                          *, hw_true):
    t = pl.program_id(1)
    n_t = pl.num_programs(1)
    thw = x_ref.shape[-1]
    ragged = (hw_true % thw) != 0          # static: only the last tile is ragged

    @pl.when(t == 0)
    def _():
        sum_sc[...] = jnp.zeros_like(sum_sc)
        max_sc[...] = jnp.full_like(max_sc, -jnp.inf)

    x = x_ref[0]                                                     # (C, thw)

    def accumulate(xs_f32, xm):
        sum_sc[...] += jnp.sum(xs_f32, axis=-1, keepdims=True)       # (C, 1)
        max_sc[...] = jnp.maximum(
            max_sc[...], jnp.max(xm, axis=-1, keepdims=True).astype(jnp.float32))

    if ragged:
        # Mask only on the last tile (the partial block's pad region holds
        # garbage); every other tile takes the mask-free path.
        @pl.when(t < n_t - 1)
        def _():
            accumulate(x.astype(jnp.float32), x)

        @pl.when(t == n_t - 1)
        def _():
            lane = t * thw + jax.lax.broadcasted_iota(jnp.int32, x.shape, 1)
            valid = lane < hw_true
            accumulate(jnp.where(valid, x, 0).astype(jnp.float32),
                       jnp.where(valid, x, -jnp.inf))
    else:
        accumulate(x.astype(jnp.float32), x)

    @pl.when(t == n_t - 1)
    def _():
        avg = sum_sc[...] * (1.0 / float(hw_true))                   # (C, 1)
        pooled = jnp.concatenate([avg, max_sc[...]], axis=-1)        # (C, 2)
        out = _gate_from_pooled(pooled, w1_ref[...], w2_ref[...])    # (C, 2)
        gate_ref[0] = jax.nn.sigmoid(out[:, 0:1] + out[:, 1:2])      # (C, 1)


def _ca_apply_kernel(gate_ref, x_ref, o_ref):
    # Pure mem-bound gated multiply over a lane-dense (C, THW) tile.  The gate
    # is cast to x's dtype so bf16 inputs stay bf16 through the multiply.
    # Out-of-bounds lanes of a ragged last tile are dropped by Pallas on store.
    gate = gate_ref[0].astype(x_ref.dtype)                           # (C, 1)
    o_ref[0] = (x_ref[0] * gate).astype(o_ref.dtype)


# --------------------------------- wrapper -------------------------------- #
def channel_attention(x, w1, w2, *, force_two_phase=False, max_tile_lanes=None):
    """CBAM ChannelAttention forward.  x: (N, C, H, W); w1: (Cmid, C); w2: (C, Cmid)."""
    N, C, H, W = x.shape
    HW = H * W
    itemsize = jnp.dtype(x.dtype).itemsize
    w_bytes = (w1.size * jnp.dtype(w1.dtype).itemsize
               + w2.size * jnp.dtype(w2.dtype).itemsize)

    # Generation-aware budgets: 128 MiB parts (v5e/v6e) get a large single-pass
    # budget (avoid the two-phase 1.5x-traffic penalty); v7x (64 MiB/TC) stays
    # well under its physical VMEM.
    vmem_cap, multi_tc = _tpu_generation()
    big_vmem = vmem_cap >= 100 * 1024 * 1024
    single_budget = (96 if big_vmem else 44) * 1024 * 1024
    vmem_ceiling = (110 if big_vmem else 52) * 1024 * 1024
    tile_target = (8 if big_vmem else 4) * 1024 * 1024

    x_flat = x.reshape(N, C, HW)            # free reshape, no data movement
    slab = C * HW * itemsize                # one (un-padded) batch element
    single_pass = (not force_two_phase) and (4 * slab + w_bytes <= single_budget)

    if single_pass:
        # Block several batch elements per grid step (amortize ~0.35 us/step
        # and use big DMA bursts).  Only on multi-TC parts (v7x) keep >= 2
        # grid steps so both TensorCores get work; on 1-TC chips let nb grow.
        max_nb = max(1, single_budget // max(1, 4 * slab))
        cap = max(1, N // 2) if (multi_tc and N >= 2) else N
        target = max(1, min(max_nb, cap, _MAX_NB))
        nb = max(d for d in range(1, target + 1) if N % d == 0)
        grid = (N // nb,)

        vmem_limit = int(min(vmem_ceiling,
                             max(16 * 1024 * 1024,
                                 4 * nb * slab + w_bytes + (4 << 20))))

        out_flat = pl.pallas_call(
            _ca_single_pass_kernel,
            out_shape=jax.ShapeDtypeStruct((N, C, HW), x.dtype),
            grid_spec=pltpu.PrefetchScalarGridSpec(
                num_scalar_prefetch=0,
                grid=grid,
                in_specs=[
                    # Full C / full HW block dims => exempt from (8,128) rule,
                    # so no wrapper pad and no in-kernel lane mask are needed.
                    pl.BlockSpec((nb, C, HW), lambda n: (n, 0, 0)),
                    pl.BlockSpec(w1.shape, lambda n: (0, 0)),
                    pl.BlockSpec(w2.shape, lambda n: (0, 0)),
                ],
                out_specs=pl.BlockSpec((nb, C, HW), lambda n: (n, 0, 0)),
            ),
            compiler_params=pltpu.CompilerParams(
                dimension_semantics=("parallel",),
                vmem_limit_bytes=vmem_limit,
            ),
        )(x_flat, w1, w2)
    else:
        # HW tile: multiple of 128 lanes (or the full HW if HW < 128),
        # ~tile_target bytes of x per tile.  The ragged last tile is handled
        # in-kernel, so no wrapper-side pad/slice passes over x.
        lanes_budget = max(_LANE, (tile_target // max(1, C * itemsize)) // _LANE * _LANE)
        hw_aligned = (HW // _LANE) * _LANE
        if hw_aligned == 0:
            thw = HW                              # tiny spatial extent: one full-dim tile
        else:
            thw = min(lanes_budget, hw_aligned)
            if max_tile_lanes is not None:
                thw = max(_LANE, min(thw, (max_tile_lanes // _LANE) * _LANE or _LANE))
        n_t = (HW + thw - 1) // thw

        tile_bytes = C * thw * itemsize
        # Phase B peak: 3 x-tiles (Buffered(3)) + 2 out-tiles; phase A is smaller.
        vmem_limit = int(min(vmem_ceiling,
                             max(16 * 1024 * 1024,
                                 5 * tile_bytes + w_bytes + (4 << 20))))

        # Phase A: per-batch sum / running-max over HW tiles -> (C, 1) gate.
        # TODO(synk): on v7x with N == 1 this reduction runs on a single
        # TensorCore; a 2-way HW split + combine step would use both cores.
        stats_kernel = functools.partial(_ca_stats_gate_kernel, hw_true=HW)
        gate = pl.pallas_call(
            stats_kernel,
            out_shape=jax.ShapeDtypeStruct((N, C, 1), jnp.float32),
            grid_spec=pltpu.PrefetchScalarGridSpec(
                num_scalar_prefetch=0,
                grid=(N, n_t),
                in_specs=[
                    pl.BlockSpec((1, C, thw), lambda n, t: (n, 0, t)),
                    pl.BlockSpec(w1.shape, lambda n, t: (0, 0)),
                    pl.BlockSpec(w2.shape, lambda n, t: (0, 0)),
                ],
                out_specs=pl.BlockSpec((1, C, 1), lambda n, t: (n, 0, 0)),
                scratch_shapes=[pltpu.VMEM((C, 1), jnp.float32),
                                pltpu.VMEM((C, 1), jnp.float32)],
            ),
            compiler_params=pltpu.CompilerParams(
                dimension_semantics=("parallel", "arbitrary"),
                vmem_limit_bytes=vmem_limit,
            ),
        )(x_flat, w1, w2)

        # Phase B: gated broadcast multiply, fully parallel, deeper x buffering.
        out_flat = pl.pallas_call(
            _ca_apply_kernel,
            out_shape=jax.ShapeDtypeStruct((N, C, HW), x.dtype),
            grid_spec=pltpu.PrefetchScalarGridSpec(
                num_scalar_prefetch=0,
                grid=(N, n_t),
                in_specs=[
                    pl.BlockSpec((1, C, 1), lambda n, t: (n, 0, 0)),
                    pl.BlockSpec((1, C, thw), lambda n, t: (n, 0, t),
                                 pipeline_mode=pl.Buffered(3)),
                ],
                out_specs=pl.BlockSpec((1, C, thw), lambda n, t: (n, 0, t)),
            ),
            compiler_params=pltpu.CompilerParams(
                dimension_semantics=("parallel", "parallel"),
                vmem_limit_bytes=vmem_limit,
            ),
        )(gate, x_flat)

    return out_flat.reshape(N, C, H, W)


def reference(x, w1, w2):
    # Pure-JAX reference mirroring the PyTorch forward.
    avg = jnp.mean(x, axis=(2, 3))           # (N, C)
    mx = jnp.max(x, axis=(2, 3))             # (N, C)

    def fc(p):
        h = jnp.maximum(p @ w1.T, 0.0)       # (N, Cmid)
        return h @ w2.T                      # (N, C)

    gate = jax.nn.sigmoid(fc(avg) + fc(mx))  # (N, C)
    return gate[:, :, None, None] * x


if __name__ == "__main__":
    N, C, H, W = 2, 4, 16, 16
    atten_factor = 1
    Cmid = C // atten_factor

    key = jax.random.PRNGKey(0)
    kx, k1, k2 = jax.random.split(key, 3)

    x = jax.random.normal(kx, (N, C, H, W), dtype=jnp.float32)
    # Conv2d(C, Cmid, 1, bias=False) weight -> (Cmid, C); Conv2d(Cmid, C, 1) -> (C, Cmid).
    w1 = jax.random.normal(k1, (Cmid, C), dtype=jnp.float32) * 0.1
    w2 = jax.random.normal(k2, (C, Cmid), dtype=jnp.float32) * 0.1

    ref = reference(x, w1, w2)

    # Single-pass (fits-in-VMEM) path.
    out = jax.block_until_ready(channel_attention(x, w1, w2))
    assert out.shape == (N, C, H, W)
    assert jnp.allclose(out, ref, atol=1e-5, rtol=1e-5), "single-pass mismatch"

    # Two-phase HW-tiled path (forced, small tiles so the reduction really tiles).
    out2 = jax.block_until_ready(
        channel_attention(x, w1, w2, force_two_phase=True, max_tile_lanes=128))
    assert jnp.allclose(out2, ref, atol=1e-5, rtol=1e-5), "two-phase mismatch"

    # Non-128-multiple spatial size: single-pass uses full-HW blocks (no pad),
    # two-phase exercises the ragged-last-tile mask / dropped OOB stores.
    x_odd = jax.random.normal(kx, (N, C, 15, 15), dtype=jnp.float32)
    ref_odd = reference(x_odd, w1, w2)
    out3 = jax.block_until_ready(channel_attention(x_odd, w1, w2))
    assert jnp.allclose(out3, ref_odd, atol=1e-5, rtol=1e-5), "odd single-pass mismatch"
    out4 = jax.block_until_ready(
        channel_attention(x_odd, w1, w2, force_two_phase=True, max_tile_lanes=128))
    assert jnp.allclose(out4, ref_odd, atol=1e-5, rtol=1e-5), "odd two-phase mismatch"

    print("KERNEL_OK")
</pallas_src>

<mosaic_0001>
module attributes {stable_mosaic.version = 11 : i64} {
  func.func @_ca_single_pass_kernel(%arg0: i32, %arg1: memref<2x4x256xf32, #tpu.memory_space<vmem>>, %arg2: memref<4x4xf32, #tpu.memory_space<vmem>>, %arg3: memref<4x4xf32, #tpu.memory_space<vmem>>, %arg4: memref<2x4x256xf32, #tpu.memory_space<vmem>>) attributes {dimension_semantics = [#tpu.dimension_semantics<parallel>], iteration_bounds = array<i64: 1>, scalar_prefetch = 0 : i64, scratch_operands = 0 : i64, tpu.core_type = #tpu.core_type<tc>, window_params = [{transform_indices = @transform_0, window_bounds = array<i64: 2, 4, 256>}, {pipeline_mode = #tpu.pipeline_mode<synchronous>, transform_indices = @transform_1, window_bounds = array<i64: 4, 4>}, {pipeline_mode = #tpu.pipeline_mode<synchronous>, transform_indices = @transform_2, window_bounds = array<i64: 4, 4>}, {transform_indices = @transform_3, window_bounds = array<i64: 2, 4, 256>}]} {
    %c0 = arith.constant 0 : index
    %c0_0 = arith.constant 0 : index
    %0 = vector.load %arg2[%c0, %c0_0] : memref<4x4xf32, #tpu.memory_space<vmem>>, vector<4x4xf32>
    %c0_1 = arith.constant 0 : index
    %c0_2 = arith.constant 0 : index
    %1 = vector.load %arg3[%c0_1, %c0_2] : memref<4x4xf32, #tpu.memory_space<vmem>>, vector<4x4xf32>
    %c0_3 = arith.constant 0 : index
    %c0_4 = arith.constant 0 : index
    %c0_5 = arith.constant 0 : index
    %2 = vector.load %arg1[%c0_3, %c0_4, %c0_5] : memref<2x4x256xf32, #tpu.memory_space<vmem>>, vector<1x4x256xf32>
    %3 = vector.shape_cast %2 : vector<1x4x256xf32> to vector<4x256xf32>
    %cst = arith.constant dense<0.000000e+00> : vector<4xf32>
    %4 = vector.multi_reduction <add>, %3, %cst [1] : vector<4x256xf32> to vector<4xf32>
    %5 = vector.shape_cast %4 : vector<4xf32> to vector<4x1xf32>
    %cst_6 = arith.constant 3.906250e-03 : f32
    %6 = vector.broadcast %cst_6 : f32 to vector<4x1xf32>
    %7 = arith.mulf %5, %6 : vector<4x1xf32>
    %cst_7 = arith.constant dense<0xFF800000> : vector<4xf32>
    %8 = vector.multi_reduction <maximumf>, %3, %cst_7 [1] : vector<4x256xf32> to vector<4xf32>
    %9 = vector.shape_cast %8 : vector<4xf32> to vector<4x1xf32>
    %c1 = arith.constant 1 : index
    %c0_8 = arith.constant 0 : index
    %c0_9 = arith.constant 0 : index
    %10 = vector.load %arg1[%c1, %c0_8, %c0_9] : memref<2x4x256xf32, #tpu.memory_space<vmem>>, vector<1x4x256xf32>
    %11 = vector.shape_cast %10 : vector<1x4x256xf32> to vector<4x256xf32>
    %cst_10 = arith.constant dense<0.000000e+00> : vector<4xf32>
    %12 = vector.multi_reduction <add>, %11, %cst_10 [1] : vector<4x256xf32> to vector<4xf32>
    %13 = vector.shape_cast %12 : vector<4xf32> to vector<4x1xf32>
    %cst_11 = arith.constant 3.906250e-03 : f32
    %14 = vector.broadcast %cst_11 : f32 to vector<4x1xf32>
    %15 = arith.mulf %13, %14 : vector<4x1xf32>
    %cst_12 = arith.constant dense<0xFF800000> : vector<4xf32>
    %16 = vector.multi_reduction <maximumf>, %11, %cst_12 [1] : vector<4x256xf32> to vector<4xf32>
    %17 = vector.shape_cast %16 : vector<4xf32> to vector<4x1xf32>
    %18 = tpu.concatenate %7, %15, %9, %17 in 1 : vector<4x1xf32>, vector<4x1xf32>, vector<4x1xf32>, vector<4x1xf32> -> vector<4x4xf32>
    %cst_13 = arith.constant dense<0.000000e+00> : vector<4x4xf32>
    %19 = tpu.matmul %0, %18, %cst_13 {dimension_numbers = #tpu.dot_dimension_numbers<[1], [0], [0], [1], [0, 0, 1, 1], [], []>} : vector<4x4xf32>, vector<4x4xf32>, vector<4x4xf32> -> vector<4x4xf32>
    %cst_14 = arith.constant 0.000000e+00 : f32
    %20 = vector.broadcast %cst_14 : f32 to vector<4x4xf32>
    %21 = arith.maximumf %19, %20 : vector<4x4xf32>
    %cst_15 = arith.constant dense<0.000000e+00> : vector<4x4xf32>
    %22 = tpu.matmul %1, %21, %cst_15 {dimension_numbers = #tpu.dot_dimension_numbers<[1], [0], [0], [1], [0, 0, 1, 1], [], []>} : vector<4x4xf32>, vector<4x4xf32>, vector<4x4xf32> -> vector<4x4xf32>
    %23 = vector.extract_strided_slice %22 {offsets = [0, 0], sizes = [4, 2], strides = [1, 1]} : vector<4x4xf32> to vector<4x2xf32>
    %24 = vector.extract_strided_slice %22 {offsets = [0, 2], sizes = [4, 2], strides = [1, 1]} : vector<4x4xf32> to vector<4x2xf32>
    %25 = arith.addf %23, %24 : vector<4x2xf32>
    %26 = arith.negf %25 : vector<4x2xf32>
    %27 = math.exp %26 : vector<4x2xf32>
    %cst_16 = arith.constant 1.000000e+00 : f32
    %28 = vector.broadcast %cst_16 : f32 to vector<4x2xf32>
    %29 = arith.addf %28, %27 : vector<4x2xf32>
    %30 = arith.divf %28, %29 : vector<4x2xf32>
    %c0_17 = arith.constant 0 : index
    %c0_18 = arith.constant 0 : index
    %c0_19 = arith.constant 0 : index
    %31 = vector.load %arg1[%c0_17, %c0_18, %c0_19] : memref<2x4x256xf32, #tpu.memory_space<vmem>>, vector<1x4x256xf32>
    %32 = vector.shape_cast %31 : vector<1x4x256xf32> to vector<4x256xf32>
    %33 = vector.extract_strided_slice %30 {offsets = [0, 0], sizes = [4, 1], strides = [1, 1]} : vector<4x2xf32> to vector<4x1xf32>
    %34 = vector.broadcast %33 : vector<4x1xf32> to vector<4x256xf32>
    %35 = arith.mulf %32, %34 : vector<4x256xf32>
    %c0_20 = arith.constant 0 : index
    %c0_21 = arith.constant 0 : index
    %c0_22 = arith.constant 0 : index
    %36 = vector.load %arg4[%c0_20, %c0_21, %c0_22] : memref<2x4x256xf32, #tpu.memory_space<vmem>>, vector<1x4x256xf32>
    %37 = vector.shape_cast %36 : vector<1x4x256xf32> to vector<4x256xf32>
    %38 = vector.shape_cast %35 : vector<4x256xf32> to vector<1x4x256xf32>
    tpu.vector_store %arg4[%c0_20, %c0_21, %c0_22], %38 {strides = array<i32>} : memref<2x4x256xf32, #tpu.memory_space<vmem>>, vector<1x4x256xf32>,
    %c1_23 = arith.constant 1 : index
    %c0_24 = arith.constant 0 : index
    %c0_25 = arith.constant 0 : index
    %39 = vector.load %arg1[%c1_23, %c0_24, %c0_25] : memref<2x4x256xf32, #tpu.memory_space<vmem>>, vector<1x4x256xf32>
    %40 = vector.shape_cast %39 : vector<1x4x256xf32> to vector<4x256xf32>
    %41 = vector.extract_strided_slice %30 {offsets = [0, 1], sizes = [4, 1], strides = [1, 1]} : vector<4x2xf32> to vector<4x1xf32>
    %42 = vector.broadcast %41 : vector<4x1xf32> to vector<4x256xf32>
    %43 = arith.mulf %40, %42 : vector<4x256xf32>
    %c1_26 = arith.constant 1 : index
    %c0_27 = arith.constant 0 : index
    %c0_28 = arith.constant 0 : index
    %44 = vector.load %arg4[%c1_26, %c0_27, %c0_28] : memref<2x4x256xf32, #tpu.memory_space<vmem>>, vector<1x4x256xf32>
    %45 = vector.shape_cast %44 : vector<1x4x256xf32> to vector<4x256xf32>
    %46 = vector.shape_cast %43 : vector<4x256xf32> to vector<1x4x256xf32>
    tpu.vector_store %arg4[%c1_26, %c0_27, %c0_28], %46 {strides = array<i32>} : memref<2x4x256xf32, #tpu.memory_space<vmem>>, vector<1x4x256xf32>,
    return
  }
  func.func @transform_0(%arg0: i32) -> (i32, i32, i32) {
    %c0_i32 = arith.constant 0 : i32
    %c0_i32_0 = arith.constant 0 : i32
    %c0_i32_1 = arith.constant 0 : i32
    return %arg0, %c0_i32, %c0_i32_0 : i32, i32, i32
  }
  func.func @transform_1(%arg0: i32) -> (i32, i32) {
    %c0_i32 = arith.constant 0 : i32
    %c0_i32_0 = arith.constant 0 : i32
    %c0_i32_1 = arith.constant 0 : i32
    return %c0_i32, %c0_i32_0 : i32, i32
  }
  func.func @transform_2(%arg0: i32) -> (i32, i32) {
    %c0_i32 = arith.constant 0 : i32
    %c0_i32_0 = arith.constant 0 : i32
    %c0_i32_1 = arith.constant 0 : i32
    return %c0_i32, %c0_i32_0 : i32, i32
  }
  func.func @transform_3(%arg0: i32) -> (i32, i32, i32) {
    %c0_i32 = arith.constant 0 : i32
    %c0_i32_0 = arith.constant 0 : i32
    %c0_i32_1 = arith.constant 0 : i32
    return %arg0, %c0_i32, %c0_i32_0 : i32, i32, i32
  }
}

</mosaic_0001>

<llo_original>
// kernel: tpu_custom_call.1
$region0: #{tpu_custom_call.1}
  #allocation0 [shape = 'u32[]', space=smem, size = 0x4, offset = 0x4, fixed_abs, tag = 'smem constant byte address 0x4 - core index']
  #allocation1 [shape = 'u32[144,128]{1,0:T(1,128)}', space=vmem, size = 0x12000, scoped, tag = 'internal scratch']
  %s0 = inlined_call_operand.hbm [shape: f32[2,4,256], index: 0, kind: input, shape index: {}]
  %s1 = inlined_call_operand.hbm [shape: f32[4,4], index: 1, kind: input, shape index: {}]
  %s2 = inlined_call_operand.vmem [shape: f32[4,4], index: 2, kind: input, shape index: {}]
  %s3 = inlined_call_operand.hbm [shape: f32[2,4,256], index: 3, kind: output, shape index: {}]
  %s4 = sld [smem:[#allocation0]]
  $region30: #{tpu_custom_call.1} parent=0
    _
  %s6 = ssub.s32 1, %s4
  %s7 = scalar_select 0, %s6, %s4
  $region1: #{tpu_custom_call.1} parent=0
    #allocation2 [shape = 'u8[8192]{0}', space=vmem, size = 0x2000, scoped, tag = 'input window, operand 0, single buffered']
    #allocation3 [shape = 's32[1]{0}', space=sflag, size = 0x4, scoped, tag = 'scoped memory for tpu_custom_call.1']
    #allocation4 [shape = 's32[1]{0}', space=sflag, size = 0x4, scoped, tag = 'scoped memory for tpu_custom_call.1']
    #allocation5 [shape = 'u8[2048]{0}', space=vmem, size = 0x800, scoped, tag = 'input window, operand 1, single buffered']
    #allocation6 [shape = 's32[1]{0}', space=sflag, size = 0x4, scoped, tag = 'scoped memory for tpu_custom_call.1']
    #allocation7 [shape = 'u8[8192]{0}', space=vmem, size = 0x2000, scoped, tag = 'output window, operand 0, single buffered']
    %8 = vsyncpa [#allocation3], 0
    %9 = vsyncpa [#allocation6], 0
    %10 = vsyncpa [#allocation4], 0
    // Predicated region
    $region2: #{tpu_custom_call.1} parent=1 // pred_check
      _
    $region3: #{tpu_custom_call.1} parent=1 // pred_check_branch
      %12 = sbr.rel (0) target = $region5
    $region4: #{tpu_custom_call.1} parent=1 // pred_region
      %s14 = ssub.s32 256, 256
      %15 = vsyncadd [#allocation3], %s14
      %s16 = sshll.u32 [#allocation2], 4
      %s17 = int_to_ptr.vmem [resolvable:$true] %s16
      %22 = dma.hbm_to_vmem [thread:$0]  %s0, 256, %s17, [#allocation3], 128, 128, 8
    $region5: #{tpu_custom_call.1} parent=1 // pred_fallthru
      _
    // Predicated region
    $region6: #{tpu_custom_call.1} parent=1 // pred_check
      _
    $region7: #{tpu_custom_call.1} parent=1 // pred_check_branch
      %24 = sbr.rel (0) target = $region9
    $region8: #{tpu_custom_call.1} parent=1 // pred_region
      %s26 = ssub.s32 64, 64
      %27 = vsyncadd [#allocation6], %s26
      %s29 = sshll.u32 [#allocation5], 4
      %s30 = int_to_ptr.vmem [resolvable:$true] %s29
      %32 = dma.hbm_to_vmem [thread:$0]  %s1, 64, %s30, [#allocation6]
    $region9: #{tpu_custom_call.1} parent=1 // pred_fallthru
      _
    // Predicated region
    $region10: #{tpu_custom_call.1} parent=1 // pred_check
      _
    $region11: #{tpu_custom_call.1} parent=1 // pred_check_branch
      %34 = sbr.rel (0) target = $region13
    $region12: #{tpu_custom_call.1} parent=1 // pred_region
      _
    $region13: #{tpu_custom_call.1} parent=1 // pred_fallthru
      _
    // Predicated region
    $region14: #{tpu_custom_call.1} parent=1 // pred_check
      _
    $region15: #{tpu_custom_call.1} parent=1 // pred_check_branch
      %36 = sbr.rel (0) target = $region17
    $region16: #{tpu_custom_call.1} parent=1 // pred_region
      %37 = dma.done [#allocation3], 256
    $region17: #{tpu_custom_call.1} parent=1 // pred_fallthru
      _
    // Predicated region
    $region18: #{tpu_custom_call.1} parent=1 // pred_check
      _
    $region19: #{tpu_custom_call.1} parent=1 // pred_check_branch
      %39 = sbr.rel (0) target = $region21
    $region20: #{tpu_custom_call.1} parent=1 // pred_region
      %40 = dma.done [#allocation6], 64
    $region21: #{tpu_custom_call.1} parent=1 // pred_fallthru
      _
    %v41 = vld [vmem:[#allocation5] sm:$0xf]
    %v42 = vld [vmem:[%s2] sm:$0xf]
    %v43 = vld [vmem:[#allocation2] sm:$0xff]
    %v45 = vcombine.high %v43, %v43
    %vm47 = vcmask 1043456
    %v48 = vsel %vm47, %v43, 0.0
    %v49 = vsel %vm47, %v45, 0.0
    %v50 = vadd.f32 %v48, %v49
    %51 = vadd.xlane.f32.xlu0 %v50
    %v52 = vpop.xlane.xlu0 %51
    %v53 = vmul.f32 %v52, 0.00390625
    %v54 = vsel %vm47, %v43, -inf
    %v55 = vsel %vm47, %v45, -inf
    %v56 = vmax.f32 %v54, %v55
    %57 = vmax.xlane.f32.xlu0 %v56
    %v58 = vpop.xlane.xlu0 %57
    %s59 = scalar_lea.vmem [#allocation2], 8
    %v60 = vld [vmem:[%s59] sm:$0xff]
    %v62 = vcombine.high %v60, %v60
    %v64 = vsel %vm47, %v60, 0.0
    %v65 = vsel %vm47, %v62, 0.0
    %v66 = vadd.f32 %v64, %v65
    %67 = vadd.xlane.f32.xlu0 %v66
    %v68 = vpop.xlane.xlu0 %67
    %v69 = vmul.f32 %v68, 0.00390625
    %v70 = vsel %vm47, %v60, -inf
    %v71 = vsel %vm47, %v62, -inf
    %v72 = vmax.f32 %v70, %v71
    %73 = vmax.xlane.f32.xlu0 %v72
    %v74 = vpop.xlane.xlu0 %73
    %vm75 = vcmask 7168
    %v76 = vsel %vm75, %v53, %v69
    %vm77 = vcmask 15360
    %v78 = vsel %vm77, %v76, %v58
    %vm79 = vcmask 23552
    %v80 = vsel %vm79, %v78, %v74
    %vm81 = vcmask 31744
    %v83 = vsel %vm81, %v41, 0
    %v86 = vsel %vm47, %v80, 0
    %88 = vmatprep.subr.mxu0 0.0
    %89 = vmatpush1.msra.mxu0 %v86
    %90 = vmatprep.subr.mxu0 0.0
    %91 = vmatpush1.msra.mxu0 0.0
    %92 = vmatprep.subr.mxu0 0.0
    %93 = vmatpush1.msra.mxu0 0.0
    %94 = vmatprep.subr.mxu0 0.0
    %95 = vmatpush1.msra.mxu0 0.0
    %96 = vmatprep.subr.mxu0 0.0
    %97 = vmatpush1.msra.mxu0 0.0
    %98 = vmatprep.subr.mxu0 0.0
    %99 = vmatpush1.msra.mxu0 0.0
    %100 = vmatprep.subr.mxu0 0.0
    %101 = vmatpush1.msra.mxu0 0.0
    %102 = vmatprep.subr.mxu0 0.0
    %103 = vmatpush1.msra.mxu0 0.0
    %104 = vmatprep.subr.mxu0 0.0
    %105 = vmatpush1.msra.mxu0 0.0
    %106 = vmatprep.subr.mxu0 0.0
    %107 = vmatpush1.msra.mxu0 0.0
    %108 = vmatprep.subr.mxu0 0.0
    %109 = vmatpush1.msra.mxu0 0.0
    %110 = vmatprep.subr.mxu0 0.0
    %111 = vmatpush1.msra.mxu0 0.0
    %112 = vmatprep.subr.mxu0 0.0
    %113 = vmatpush1.msra.mxu0 0.0
    %114 = vmatprep.subr.mxu0 0.0
    %115 = vmatpush1.msra.mxu0 0.0
    %116 = vmatprep.subr.mxu0 0.0
    %117 = vmatpush1.msra.mxu0 0.0
    %118 = vmatprep.subr.mxu0 0.0
    %119 = vmatpush1.msra.mxu0 0.0
    %120 = vmatprep.subr.mxu0 0.0
    %121 = vmatpush1.msra.mxu0 0.0
    %122 = vmatprep.subr.mxu0 0.0
    %123 = vmatpush1.msra.mxu0 0.0
    %124 = vmatprep.subr.mxu0 0.0
    %125 = vmatpush1.msra.mxu0 0.0
    %126 = vmatprep.subr.mxu0 0.0
    %127 = vmatpush1.msra.mxu0 0.0
    %128 = vmatprep.subr.mxu0 0.0
    %129 = vmatpush1.msra.mxu0 0.0
    %130 = vmatprep.subr.mxu0 0.0
    %131 = vmatpush1.msra.mxu0 0.0
    %132 = vmatprep.subr.mxu0 0.0
    %133 = vmatpush1.msra.mxu0 0.0
    %134 = vmatprep.subr.mxu0 0.0
    %135 = vmatpush1.msra.mxu0 0.0
    %136 = vmatprep.subr.mxu0 0.0
    %137 = vmatpush1.msra.mxu0 0.0
    %138 = vmatprep.subr.mxu0 0.0
    %139 = vmatpush1.msra.mxu0 0.0
    %140 = vmatprep.subr.mxu0 0.0
    %141 = vmatpush1.msra.mxu0 0.0
    %142 = vmatprep.subr.mxu0 0.0
    %143 = vmatpush1.msra.mxu0 0.0
    %144 = vmatprep.subr.mxu0 0.0
    %145 = vmatpush1.msra.mxu0 0.0
    %146 = vmatprep.subr.mxu0 0.0
    %147 = vmatpush1.msra.mxu0 0.0
    %148 = vmatprep.subr.mxu0 0.0
    %149 = vmatpush1.msra.mxu0 0.0
    %150 = vmatprep.subr.mxu0 0.0
    %151 = vmatpush1.msra.mxu0 0.0
    %152 = vmatprep.mubr.f32.mxu0 0.0
    %153 = vmatmul.mubr.f32.gmra.mrb[0].mxu0 %v83
    %v154 = vpop.f32.mrb[0].mxu0
    %v155 = vadd.f32 0.0, %v154
    %v156 = vpop.f32.mrb[0].mxu0
    %157 = vdwg.mxu0
    %v158 = vmax.f32 %v155, 0.0
    %v160 = vsel %vm81, %v42, 0
    %v163 = vsel %vm47, %v158, 0
    %165 = vmatprep.subr.mxu0 0.0
    %166 = vmatpush1.msra.mxu0 %v163
    %167 = vmatprep.subr.mxu0 0.0
    %168 = vmatpush1.msra.mxu0 0.0
    %169 = vmatprep.subr.mxu0 0.0
    %170 = vmatpush1.msra.mxu0 0.0
    %171 = vmatprep.subr.mxu0 0.0
    %172 = vmatpush1.msra.mxu0 0.0
    %173 = vmatprep.subr.mxu0 0.0
    %174 = vmatpush1.msra.mxu0 0.0
    %175 = vmatprep.subr.mxu0 0.0
    %176 = vmatpush1.msra.mxu0 0.0
    %177 = vmatprep.subr.mxu0 0.0
    %178 = vmatpush1.msra.mxu0 0.0
    %179 = vmatprep.subr.mxu0 0.0
    %180 = vmatpush1.msra.mxu0 0.0
    %181 = vmatprep.subr.mxu0 0.0
    %182 = vmatpush1.msra.mxu0 0.0
    %183 = vmatprep.subr.mxu0 0.0
    %184 = vmatpush1.msra.mxu0 0.0
    %185 = vmatprep.subr.mxu0 0.0
    %186 = vmatpush1.msra.mxu0 0.0
    %187 = vmatprep.subr.mxu0 0.0
    %188 = vmatpush1.msra.mxu0 0.0
    %189 = vmatprep.subr.mxu0 0.0
    %190 = vmatpush1.msra.mxu0 0.0
    %191 = vmatprep.subr.mxu0 0.0
    %192 = vmatpush1.msra.mxu0 0.0
    %193 = vmatprep.subr.mxu0 0.0
    %194 = vmatpush1.msra.mxu0 0.0
    %195 = vmatprep.subr.mxu0 0.0
    %196 = vmatpush1.msra.mxu0 0.0
    %197 = vmatprep.subr.mxu0 0.0
    %198 = vmatpush1.msra.mxu0 0.0
    %199 = vmatprep.subr.mxu0 0.0
    %200 = vmatpush1.msra.mxu0 0.0
    %201 = vmatprep.subr.mxu0 0.0
    %202 = vmatpush1.msra.mxu0 0.0
    %203 = vmatprep.subr.mxu0 0.0
    %204 = vmatpush1.msra.mxu0 0.0
    %205 = vmatprep.subr.mxu0 0.0
    %206 = vmatpush1.msra.mxu0 0.0
    %207 = vmatprep.subr.mxu0 0.0
    %208 = vmatpush1.msra.mxu0 0.0
    %209 = vmatprep.subr.mxu0 0.0
    %210 = vmatpush1.msra.mxu0 0.0
    %211 = vmatprep.subr.mxu0 0.0
    %212 = vmatpush1.msra.mxu0 0.0
    %213 = vmatprep.subr.mxu0 0.0
    %214 = vmatpush1.msra.mxu0 0.0
    %215 = vmatprep.subr.mxu0 0.0
    %216 = vmatpush1.msra.mxu0 0.0
    %217 = vmatprep.subr.mxu0 0.0
    %218 = vmatpush1.msra.mxu0 0.0
    %219 = vmatprep.subr.mxu0 0.0
    %220 = vmatpush1.msra.mxu0 0.0
    %221 = vmatprep.subr.mxu0 0.0
    %222 = vmatpush1.msra.mxu0 0.0
    %223 = vmatprep.subr.mxu0 0.0
    %224 = vmatpush1.msra.mxu0 0.0
    %225 = vmatprep.subr.mxu0 0.0
    %226 = vmatpush1.msra.mxu0 0.0
    %227 = vmatprep.subr.mxu0 0.0
    %228 = vmatpush1.msra.mxu0 0.0
    %229 = vmatprep.mubr.f32.mxu0 0.0
    %230 = vmatmul.mubr.f32.gmra.mrb[0].mxu0 %v160
    %v231 = vpop.f32.mrb[0].mxu0
    %v232 = vadd.f32 0.0, %v231
    %v233 = vpop.f32.mrb[0].mxu0
    %234 = vdwg.mxu0
    %236 = vrot.lane.b32.xlu0 %v232, 126
    %v237 = vpop.permute.xlu0 %236
    %v239 = vadd.f32 %v232, %v237
    %v240 = vxor.u32 %v239, 2147483648
    %v241 = vmul.f32 %v240, 1.442695
    %v242 = vpow.pop %v241
    %v243 = vadd.f32 %v242, 1.0
    %v244 = vrcp.pop %v243
    %v245 = vmul.f32 1.0, %v244
    %247 = vset.pattern.permute.xlu0 0
    %248 = vperm.xlu0 %247, %v245
    %v249 = vpop.permute.xlu0 %248
    %v251 = vunpack.c.l.s4 839922192
    %v252 = vunpack.c.0.s8 %v251
    %v253 = vlaneseq
    %v254 = vshrl.u32 %v253, 7
    %v255 = vsub.s32 %v252, %v254
    %v256 = vrot.slane %v249, %v255
    %v258 = vmul.f32 %v43, %v256
    %259 = vst [vmem:[#allocation7] sm:$0xff] %v258
    %v260 = vld [vmem:[%s59] sm:$0xff]
    %261 = vset.pattern.permute.xlu0 1
    %262 = vperm.xlu0 %261, %v245
    %v263 = vpop.permute.xlu0 %262
    %v265 = vunpack.c.l.s4 839922192
    %v266 = vunpack.c.0.s8 %v265
    %v267 = vlaneseq
    %v268 = vshrl.u32 %v267, 7
    %v269 = vsub.s32 %v266, %v268
    %v270 = vrot.slane %v263, %v269
    %v272 = vmul.f32 %v260, %v270
    %s273 = scalar_lea.vmem [#allocation7], 8
    %274 = vst [vmem:[%s273] sm:$0xff] %v272
    // Predicated region
    $region22: #{tpu_custom_call.1} parent=1 // pred_check
      _
    $region23: #{tpu_custom_call.1} parent=1 // pred_check_branch
      %276 = sbr.rel (0) target = $region25
    $region24: #{tpu_custom_call.1} parent=1 // pred_region
      %s278 = ssub.s32 256, 256
      %279 = vsyncadd [#allocation4], %s278
      %s280 = sshll.u32 [#allocation7], 4
      %s281 = int_to_ptr.vmem [resolvable:$true] %s280
      %286 = dma.vmem_to_hbm [thread:$0]  %s281, 256, %s3, [#allocation4], 128, 128, 8
    $region25: #{tpu_custom_call.1} parent=1 // pred_fallthru
      _
    // Predicated region
    $region26: #{tpu_custom_call.1} parent=1 // pred_check
      _
    $region27: #{tpu_custom_call.1} parent=1 // pred_check_branch
      %288 = sbr.rel (0) target = $region29
    $region28: #{tpu_custom_call.1} parent=1 // pred_region
      %289 = dma.done [#allocation4], 256
    $region29: #{tpu_custom_call.1} parent=1 // pred_fallthru
      _
    %290 = vsyncpa [#allocation3], 1
    %291 = vsyncpa [#allocation6], 1
    %292 = vsyncpa [#allocation4], 1

</llo_original>
